<compile_context>
chip_gen: v7x
topology: tpu7x:2x2x1
jax: 0.10.0
libtpu: 0.0.40
codegen_flags: <defaults>
</compile_context>

<pallas_src>
import jax
import jax.numpy as jnp
from jax.experimental import pallas as pl
from jax.experimental.pallas import tpu as pltpu

C_LIGHT = 299792458.0  # speed of light [m/s]


def _cmul(ar, ai, br, bi):
    return ar * br - ai * bi, ar * bi + ai * br


def fresnel_kernel(phi_ref, cphi_ref, sphi_ref, x_ref, o_ref):
    phi = phi_ref[...]       # (1, F)  = k0 * d   (broadcasts over (2, TB, F))
    cphi = cphi_ref[...]     # (1, F)  = cos(phi)
    sphi = sphi_ref[...]     # (1, F)  = sin(phi)
    x = x_ref[...]           # (8, TB, F) channel-major block

    n = x[0:2]               # (2, TB, F) refractive index
    kk = x[2:4]              # (2, TB, F) extinction coefficient
    zr = x[4:6]              # (2, TB, F) impedance (real)
    zi = x[6:8]              # (2, TB, F) impedance (imag)

    # r12 = (Z2 - 1) / (Z2 + 1)   -- the only front-end complex divide.
    br = zr + 1.0
    inv = 1.0 / (br * br + zi * zi)
    r12_r = ((zr - 1.0) * br + zi * zi) * inv
    r12_i = 2.0 * zi * inv

    # P2 = exp(i*phi*(n + i*k)) = exp(-phi*k) * (cos(phi*n) + i*sin(phi*n))
    mag = jnp.exp(-(phi * kk))
    pn = phi * n
    P2_r = mag * jnp.cos(pn)
    P2_i = mag * jnp.sin(pn)

    # P2^2 and r12^2
    P2sq_r = P2_r * P2_r - P2_i * P2_i
    P2sq_i = 2.0 * P2_r * P2_i
    r12sq_r = r12_r * r12_r - r12_i * r12_i
    r12sq_i = 2.0 * r12_r * r12_i

    # Shared denominator: 1 + r12*r23*P2^2 = 1 - r12^2 * P2^2
    q_r, q_i = _cmul(r12sq_r, r12sq_i, P2sq_r, P2sq_i)
    den_r = 1.0 - q_r
    den_i = -q_i
    inv2 = 1.0 / (den_r * den_r + den_i * den_i)

    # r123 = (r12 + r23*P2^2) / den = r12 * (1 - P2^2) / den
    nr_r, nr_i = _cmul(r12_r, r12_i, 1.0 - P2sq_r, -P2sq_i)
    r123_r = (nr_r * den_r + nr_i * den_i) * inv2
    r123_i = (nr_i * den_r - nr_r * den_i) * inv2

    # t123 = t12*t23*P2 / den / exp(i*phi) = (1 - r12^2)*P2 / den * exp(-i*phi)
    nt_r, nt_i = _cmul(1.0 - r12sq_r, -r12sq_i, P2_r, P2_i)
    tA_r = (nt_r * den_r + nt_i * den_i) * inv2
    tA_i = (nt_i * den_r - nt_r * den_i) * inv2
    t123_r = tA_r * cphi + tA_i * sphi
    t123_i = tA_i * cphi - tA_r * sphi

    # Channel order (matches PyTorch output, channel-major here):
    # [Re r0, Im r0, Re r1, Im r1, Re t0, Im t0, Re t1, Im t1]
    o_ref[...] = jnp.concatenate(
        [r123_r[0:1], r123_i[0:1], r123_r[1:2], r123_i[1:2],
         t123_r[0:1], t123_i[0:1], t123_r[1:2], t123_i[1:2]], axis=0)


def fresnel_forward(x, d, freq, *, max_tb=512):
    """x: (B, 8, F) float32; d: scalar thickness; freq: (F,) float32."""
    B, C, F = x.shape
    assert C == 8, "expected 8 channels: [n0,n1,k0,k1,Zr0,Zr1,Zi0,Zi1]"
    dtype = x.dtype

    # Lane-dense frequency axis.
    Fp = max(128, pl.cdiv(F, 128) * 128)
    pad_f = Fp - F

    # Batch tile: multiple of 8 sublanes; ~2 MiB per f32 (8, TB, Fp) tile so
    # double-buffered input + output fits comfortably in VMEM on v5e/v6e/v7x.
    tb_budget = max(8, ((2 * 1024 * 1024) // (8 * Fp * 4)) // 8 * 8)
    TB = min(max_tb, tb_budget, pl.cdiv(B, 8) * 8)
    TB = max(8, (TB // 8) * 8)
    Bp = pl.cdiv(B, TB) * TB
    pad_b = Bp - B

    # Channel-major layout so per-channel tensors fill all 8 sublanes.
    x_cm = jnp.transpose(x, (1, 0, 2))
    if pad_b or pad_f:
        # Pad with 1.0 (Z2=1 etc.) so padded lanes stay finite; sliced off below.
        x_cm = jnp.pad(x_cm, ((0, 0), (0, pad_b), (0, pad_f)),
                       constant_values=1.0)

    # Batch-invariant precompute (hoisted out of the kernel).
    freq_p = freq.astype(dtype)
    if pad_f:
        freq_p = jnp.pad(freq_p, (0, pad_f), constant_values=1.0)
    k0 = ((2.0 * jnp.pi) * freq_p / C_LIGHT).astype(dtype)
    phi = (k0 * jnp.asarray(d, dtype=dtype)).reshape(1, Fp)
    cphi = jnp.cos(phi)
    sphi = jnp.sin(phi)

    grid = (Bp // TB,)
    out_cm = pl.pallas_call(
        fresnel_kernel,
        out_shape=jax.ShapeDtypeStruct((8, Bp, Fp), dtype),
        grid=grid,
        in_specs=[
            pl.BlockSpec((1, Fp), lambda b: (0, 0)),          # phi
            pl.BlockSpec((1, Fp), lambda b: (0, 0)),          # cos(phi)
            pl.BlockSpec((1, Fp), lambda b: (0, 0)),          # sin(phi)
            pl.BlockSpec((8, TB, Fp), lambda b: (0, b, 0)),   # x (channel-major)
        ],
        out_specs=pl.BlockSpec((8, TB, Fp), lambda b: (0, b, 0)),
        compiler_params=pltpu.CompilerParams(
            dimension_semantics=("parallel",)),
    )(phi, cphi, sphi, x_cm)

    # Back to the module's (B, 8, F) layout.
    return jnp.transpose(out_cm[:, :B, :F], (1, 0, 2))


def fresnel_ref(x, d, freq):
    """Pure-JAX complex reference matching the PyTorch forward."""
    n = x[:, 0:2, :]
    k = x[:, 2:4, :]
    zr = x[:, 4:6, :]
    zi = x[:, 6:8, :]
    n_hat = n + 1j * k
    k0 = (2.0 * jnp.pi * freq / C_LIGHT).astype(x.dtype)[None, None, :]
    Z2 = zr + 1j * zi
    t12 = 2 * Z2 / (1 + Z2)
    t23 = 2 / (Z2 + 1)
    r12 = (Z2 - 1) / (1 + Z2)
    r23 = (1 - Z2) / (Z2 + 1)
    P2 = jnp.exp(1j * k0 * d * n_hat)
    t123 = t12 * t23 * P2 / (1 + r12 * r23 * P2 ** 2) / jnp.exp(1j * k0 * d)
    r123 = (r12 + r23 * P2 ** 2) / (1 + r12 * r23 * P2 ** 2)
    return jnp.concatenate(
        [r123[:, 0:1].real, r123[:, 0:1].imag,
         r123[:, 1:2].real, r123[:, 1:2].imag,
         t123[:, 0:1].real, t123[:, 0:1].imag,
         t123[:, 1:2].real, t123[:, 1:2].imag], axis=1)


if __name__ == "__main__":
    B, F = 2, 128
    key = jax.random.PRNGKey(0)
    k1, k2, k3, k4 = jax.random.split(key, 4)

    # Physically-plausible synthetic inputs (deterministic).
    n_val = 1.0 + 2.0 * jax.random.uniform(k1, (B, 2, F), dtype=jnp.float32)
    k_val = 0.1 * jax.random.uniform(k2, (B, 2, F), dtype=jnp.float32)
    zr_val = 0.5 + jax.random.uniform(k3, (B, 2, F), dtype=jnp.float32)
    zi_val = 0.2 * jax.random.uniform(k4, (B, 2, F), dtype=jnp.float32) - 0.1
    x = jnp.concatenate([n_val, k_val, zr_val, zi_val], axis=1)   # (B, 8, F)

    freq = jnp.linspace(0.5e12, 1.5e12, F, dtype=jnp.float32)     # THz band
    d = 1e-4                                                      # 100 um thickness

    out = fresnel_forward(x, d, freq)
    out = jax.block_until_ready(out)

    ref = fresnel_ref(x, d, freq)
    assert out.shape == (B, 8, F)
    assert jnp.allclose(out, ref, rtol=1e-4, atol=1e-4), "mismatch vs reference"

    print("KERNEL_OK")
</pallas_src>

<mosaic_0001>
module attributes {stable_mosaic.version = 11 : i64} {
  func.func @fresnel_kernel(%arg0: i32, %arg1: memref<1x128xf32, #tpu.memory_space<vmem>>, %arg2: memref<1x128xf32, #tpu.memory_space<vmem>>, %arg3: memref<1x128xf32, #tpu.memory_space<vmem>>, %arg4: memref<8x8x128xf32, #tpu.memory_space<vmem>>, %arg5: memref<8x8x128xf32, #tpu.memory_space<vmem>>) attributes {dimension_semantics = [#tpu.dimension_semantics<parallel>], iteration_bounds = array<i64: 1>, scalar_prefetch = 0 : i64, scratch_operands = 0 : i64, tpu.core_type = #tpu.core_type<tc>, window_params = [{pipeline_mode = #tpu.pipeline_mode<synchronous>, transform_indices = @transform_0, window_bounds = array<i64: 1, 128>}, {pipeline_mode = #tpu.pipeline_mode<synchronous>, transform_indices = @transform_1, window_bounds = array<i64: 1, 128>}, {pipeline_mode = #tpu.pipeline_mode<synchronous>, transform_indices = @transform_2, window_bounds = array<i64: 1, 128>}, {transform_indices = @transform_3, window_bounds = array<i64: 8, 8, 128>}, {transform_indices = @transform_4, window_bounds = array<i64: 8, 8, 128>}]} {
    %c0 = arith.constant 0 : index
    %c0_0 = arith.constant 0 : index
    %0 = vector.load %arg1[%c0, %c0_0] : memref<1x128xf32, #tpu.memory_space<vmem>>, vector<1x128xf32>
    %c0_1 = arith.constant 0 : index
    %c0_2 = arith.constant 0 : index
    %1 = vector.load %arg2[%c0_1, %c0_2] : memref<1x128xf32, #tpu.memory_space<vmem>>, vector<1x128xf32>
    %c0_3 = arith.constant 0 : index
    %c0_4 = arith.constant 0 : index
    %2 = vector.load %arg3[%c0_3, %c0_4] : memref<1x128xf32, #tpu.memory_space<vmem>>, vector<1x128xf32>
    %c0_5 = arith.constant 0 : index
    %c0_6 = arith.constant 0 : index
    %c0_7 = arith.constant 0 : index
    %3 = vector.load %arg4[%c0_5, %c0_6, %c0_7] : memref<8x8x128xf32, #tpu.memory_space<vmem>>, vector<8x8x128xf32>
    %4 = vector.extract_strided_slice %3 {offsets = [0, 0, 0], sizes = [2, 8, 128], strides = [1, 1, 1]} : vector<8x8x128xf32> to vector<2x8x128xf32>
    %5 = vector.extract_strided_slice %3 {offsets = [2, 0, 0], sizes = [2, 8, 128], strides = [1, 1, 1]} : vector<8x8x128xf32> to vector<2x8x128xf32>
    %6 = vector.extract_strided_slice %3 {offsets = [4, 0, 0], sizes = [2, 8, 128], strides = [1, 1, 1]} : vector<8x8x128xf32> to vector<2x8x128xf32>
    %7 = vector.extract_strided_slice %3 {offsets = [6, 0, 0], sizes = [2, 8, 128], strides = [1, 1, 1]} : vector<8x8x128xf32> to vector<2x8x128xf32>
    %cst = arith.constant 1.000000e+00 : f32
    %8 = vector.broadcast %cst : f32 to vector<2x8x128xf32>
    %9 = arith.addf %6, %8 : vector<2x8x128xf32>
    %10 = arith.mulf %9, %9 : vector<2x8x128xf32>
    %11 = arith.mulf %7, %7 : vector<2x8x128xf32>
    %12 = arith.addf %10, %11 : vector<2x8x128xf32>
    %cst_8 = arith.constant 1.000000e+00 : f32
    %13 = vector.broadcast %cst_8 : f32 to vector<2x8x128xf32>
    %14 = arith.divf %13, %12 : vector<2x8x128xf32>
    %cst_9 = arith.constant 1.000000e+00 : f32
    %15 = vector.broadcast %cst_9 : f32 to vector<2x8x128xf32>
    %16 = arith.subf %6, %15 : vector<2x8x128xf32>
    %17 = arith.mulf %16, %9 : vector<2x8x128xf32>
    %18 = arith.mulf %7, %7 : vector<2x8x128xf32>
    %19 = arith.addf %17, %18 : vector<2x8x128xf32>
    %20 = arith.mulf %19, %14 : vector<2x8x128xf32>
    %cst_10 = arith.constant 2.000000e+00 : f32
    %21 = vector.broadcast %cst_10 : f32 to vector<2x8x128xf32>
    %22 = arith.mulf %21, %7 : vector<2x8x128xf32>
    %23 = arith.mulf %22, %14 : vector<2x8x128xf32>
    %24 = vector.shape_cast %0 : vector<1x128xf32> to vector<1x1x128xf32>
    %25 = vector.broadcast %24 : vector<1x1x128xf32> to vector<2x8x128xf32>
    %26 = arith.mulf %25, %5 : vector<2x8x128xf32>
    %cst_11 = arith.constant 0.000000e+00 : f32
    %27 = vector.broadcast %cst_11 : f32 to vector<2x8x128xf32>
    %28 = arith.subf %27, %26 : vector<2x8x128xf32>
    %29 = math.exp %28 : vector<2x8x128xf32>
    %30 = vector.shape_cast %0 : vector<1x128xf32> to vector<1x1x128xf32>
    %31 = vector.broadcast %30 : vector<1x1x128xf32> to vector<2x8x128xf32>
    %32 = arith.mulf %31, %4 : vector<2x8x128xf32>
    %33 = math.cos %32 : vector<2x8x128xf32>
    %34 = arith.mulf %29, %33 : vector<2x8x128xf32>
    %35 = math.sin %32 : vector<2x8x128xf32>
    %36 = arith.mulf %29, %35 : vector<2x8x128xf32>
    %37 = arith.mulf %34, %34 : vector<2x8x128xf32>
    %38 = arith.mulf %36, %36 : vector<2x8x128xf32>
    %39 = arith.subf %37, %38 : vector<2x8x128xf32>
    %cst_12 = arith.constant 2.000000e+00 : f32
    %40 = vector.broadcast %cst_12 : f32 to vector<2x8x128xf32>
    %41 = arith.mulf %40, %34 : vector<2x8x128xf32>
    %42 = arith.mulf %41, %36 : vector<2x8x128xf32>
    %43 = arith.mulf %20, %20 : vector<2x8x128xf32>
    %44 = arith.mulf %23, %23 : vector<2x8x128xf32>
    %45 = arith.subf %43, %44 : vector<2x8x128xf32>
    %cst_13 = arith.constant 2.000000e+00 : f32
    %46 = vector.broadcast %cst_13 : f32 to vector<2x8x128xf32>
    %47 = arith.mulf %46, %20 : vector<2x8x128xf32>
    %48 = arith.mulf %47, %23 : vector<2x8x128xf32>
    %49 = arith.mulf %45, %39 : vector<2x8x128xf32>
    %50 = arith.mulf %48, %42 : vector<2x8x128xf32>
    %51 = arith.subf %49, %50 : vector<2x8x128xf32>
    %52 = arith.mulf %45, %42 : vector<2x8x128xf32>
    %53 = arith.mulf %48, %39 : vector<2x8x128xf32>
    %54 = arith.addf %52, %53 : vector<2x8x128xf32>
    %cst_14 = arith.constant 1.000000e+00 : f32
    %55 = vector.broadcast %cst_14 : f32 to vector<2x8x128xf32>
    %56 = arith.subf %55, %51 : vector<2x8x128xf32>
    %cst_15 = arith.constant 0.000000e+00 : f32
    %57 = vector.broadcast %cst_15 : f32 to vector<2x8x128xf32>
    %58 = arith.subf %57, %54 : vector<2x8x128xf32>
    %59 = arith.mulf %56, %56 : vector<2x8x128xf32>
    %60 = arith.mulf %58, %58 : vector<2x8x128xf32>
    %61 = arith.addf %59, %60 : vector<2x8x128xf32>
    %cst_16 = arith.constant 1.000000e+00 : f32
    %62 = vector.broadcast %cst_16 : f32 to vector<2x8x128xf32>
    %63 = arith.divf %62, %61 : vector<2x8x128xf32>
    %cst_17 = arith.constant 1.000000e+00 : f32
    %64 = vector.broadcast %cst_17 : f32 to vector<2x8x128xf32>
    %65 = arith.subf %64, %39 : vector<2x8x128xf32>
    %cst_18 = arith.constant 0.000000e+00 : f32
    %66 = vector.broadcast %cst_18 : f32 to vector<2x8x128xf32>
    %67 = arith.subf %66, %42 : vector<2x8x128xf32>
    %68 = arith.mulf %20, %65 : vector<2x8x128xf32>
    %69 = arith.mulf %23, %67 : vector<2x8x128xf32>
    %70 = arith.subf %68, %69 : vector<2x8x128xf32>
    %71 = arith.mulf %20, %67 : vector<2x8x128xf32>
    %72 = arith.mulf %23, %65 : vector<2x8x128xf32>
    %73 = arith.addf %71, %72 : vector<2x8x128xf32>
    %74 = arith.mulf %70, %56 : vector<2x8x128xf32>
    %75 = arith.mulf %73, %58 : vector<2x8x128xf32>
    %76 = arith.addf %74, %75 : vector<2x8x128xf32>
    %77 = arith.mulf %76, %63 : vector<2x8x128xf32>
    %78 = arith.mulf %73, %56 : vector<2x8x128xf32>
    %79 = arith.mulf %70, %58 : vector<2x8x128xf32>
    %80 = arith.subf %78, %79 : vector<2x8x128xf32>
    %81 = arith.mulf %80, %63 : vector<2x8x128xf32>
    %cst_19 = arith.constant 1.000000e+00 : f32
    %82 = vector.broadcast %cst_19 : f32 to vector<2x8x128xf32>
    %83 = arith.subf %82, %45 : vector<2x8x128xf32>
    %cst_20 = arith.constant 0.000000e+00 : f32
    %84 = vector.broadcast %cst_20 : f32 to vector<2x8x128xf32>
    %85 = arith.subf %84, %48 : vector<2x8x128xf32>
    %86 = arith.mulf %83, %34 : vector<2x8x128xf32>
    %87 = arith.mulf %85, %36 : vector<2x8x128xf32>
    %88 = arith.subf %86, %87 : vector<2x8x128xf32>
    %89 = arith.mulf %83, %36 : vector<2x8x128xf32>
    %90 = arith.mulf %85, %34 : vector<2x8x128xf32>
    %91 = arith.addf %89, %90 : vector<2x8x128xf32>
    %92 = arith.mulf %88, %56 : vector<2x8x128xf32>
    %93 = arith.mulf %91, %58 : vector<2x8x128xf32>
    %94 = arith.addf %92, %93 : vector<2x8x128xf32>
    %95 = arith.mulf %94, %63 : vector<2x8x128xf32>
    %96 = arith.mulf %91, %56 : vector<2x8x128xf32>
    %97 = arith.mulf %88, %58 : vector<2x8x128xf32>
    %98 = arith.subf %96, %97 : vector<2x8x128xf32>
    %99 = arith.mulf %98, %63 : vector<2x8x128xf32>
    %100 = vector.shape_cast %1 : vector<1x128xf32> to vector<1x1x128xf32>
    %101 = vector.broadcast %100 : vector<1x1x128xf32> to vector<2x8x128xf32>
    %102 = arith.mulf %95, %101 : vector<2x8x128xf32>
    %103 = vector.shape_cast %2 : vector<1x128xf32> to vector<1x1x128xf32>
    %104 = vector.broadcast %103 : vector<1x1x128xf32> to vector<2x8x128xf32>
    %105 = arith.mulf %99, %104 : vector<2x8x128xf32>
    %106 = arith.addf %102, %105 : vector<2x8x128xf32>
    %107 = vector.shape_cast %1 : vector<1x128xf32> to vector<1x1x128xf32>
    %108 = vector.broadcast %107 : vector<1x1x128xf32> to vector<2x8x128xf32>
    %109 = arith.mulf %99, %108 : vector<2x8x128xf32>
    %110 = vector.shape_cast %2 : vector<1x128xf32> to vector<1x1x128xf32>
    %111 = vector.broadcast %110 : vector<1x1x128xf32> to vector<2x8x128xf32>
    %112 = arith.mulf %95, %111 : vector<2x8x128xf32>
    %113 = arith.subf %109, %112 : vector<2x8x128xf32>
    %114 = vector.extract_strided_slice %77 {offsets = [0, 0, 0], sizes = [1, 8, 128], strides = [1, 1, 1]} : vector<2x8x128xf32> to vector<1x8x128xf32>
    %115 = vector.extract_strided_slice %81 {offsets = [0, 0, 0], sizes = [1, 8, 128], strides = [1, 1, 1]} : vector<2x8x128xf32> to vector<1x8x128xf32>
    %116 = vector.extract_strided_slice %77 {offsets = [1, 0, 0], sizes = [1, 8, 128], strides = [1, 1, 1]} : vector<2x8x128xf32> to vector<1x8x128xf32>
    %117 = vector.extract_strided_slice %81 {offsets = [1, 0, 0], sizes = [1, 8, 128], strides = [1, 1, 1]} : vector<2x8x128xf32> to vector<1x8x128xf32>
    %118 = vector.extract_strided_slice %106 {offsets = [0, 0, 0], sizes = [1, 8, 128], strides = [1, 1, 1]} : vector<2x8x128xf32> to vector<1x8x128xf32>
    %119 = vector.extract_strided_slice %113 {offsets = [0, 0, 0], sizes = [1, 8, 128], strides = [1, 1, 1]} : vector<2x8x128xf32> to vector<1x8x128xf32>
    %120 = vector.extract_strided_slice %106 {offsets = [1, 0, 0], sizes = [1, 8, 128], strides = [1, 1, 1]} : vector<2x8x128xf32> to vector<1x8x128xf32>
    %121 = vector.extract_strided_slice %113 {offsets = [1, 0, 0], sizes = [1, 8, 128], strides = [1, 1, 1]} : vector<2x8x128xf32> to vector<1x8x128xf32>
    %122 = tpu.concatenate %114, %115, %116, %117, %118, %119, %120, %121 in 0 : vector<1x8x128xf32>, vector<1x8x128xf32>, vector<1x8x128xf32>, vector<1x8x128xf32>, vector<1x8x128xf32>, vector<1x8x128xf32>, vector<1x8x128xf32>, vector<1x8x128xf32> -> vector<8x8x128xf32>
    %c0_21 = arith.constant 0 : index
    %c0_22 = arith.constant 0 : index
    %c0_23 = arith.constant 0 : index
    %123 = vector.load %arg5[%c0_21, %c0_22, %c0_23] : memref<8x8x128xf32, #tpu.memory_space<vmem>>, vector<8x8x128xf32>
    tpu.vector_store %arg5[%c0_21, %c0_22, %c0_23], %122 {strides = array<i32>} : memref<8x8x128xf32, #tpu.memory_space<vmem>>, vector<8x8x128xf32>,
    return
  }
  func.func @transform_0(%arg0: i32) -> (i32, i32) {
    %c0_i32 = arith.constant 0 : i32
    %c0_i32_0 = arith.constant 0 : i32
    %c0_i32_1 = arith.constant 0 : i32
    return %c0_i32, %c0_i32_0 : i32, i32
  }
  func.func @transform_1(%arg0: i32) -> (i32, i32) {
    %c0_i32 = arith.constant 0 : i32
    %c0_i32_0 = arith.constant 0 : i32
    %c0_i32_1 = arith.constant 0 : i32
    return %c0_i32, %c0_i32_0 : i32, i32
  }
  func.func @transform_2(%arg0: i32) -> (i32, i32) {
    %c0_i32 = arith.constant 0 : i32
    %c0_i32_0 = arith.constant 0 : i32
    %c0_i32_1 = arith.constant 0 : i32
    return %c0_i32, %c0_i32_0 : i32, i32
  }
  func.func @transform_3(%arg0: i32) -> (i32, i32, i32) {
    %c0_i32 = arith.constant 0 : i32
    %c0_i32_0 = arith.constant 0 : i32
    %c0_i32_1 = arith.constant 0 : i32
    return %c0_i32, %arg0, %c0_i32_0 : i32, i32, i32
  }
  func.func @transform_4(%arg0: i32) -> (i32, i32, i32) {
    %c0_i32 = arith.constant 0 : i32
    %c0_i32_0 = arith.constant 0 : i32
    %c0_i32_1 = arith.constant 0 : i32
    return %c0_i32, %arg0, %c0_i32_0 : i32, i32, i32
  }
}

</mosaic_0001>

<llo_original>
// kernel: tpu_custom_call.1
$region0: #{tpu_custom_call.1}
  #allocation0 [shape = 'u32[]', space=smem, size = 0x4, offset = 0x4, fixed_abs, tag = 'smem constant byte address 0x4 - core index']
  #allocation1 [shape = 'u32[144,128]{1,0:T(1,128)}', space=vmem, size = 0x12000, scoped, tag = 'internal scratch']
  %s0 = inlined_call_operand.hbm [shape: f32[1,128], index: 0, kind: input, shape index: {}]
  %s1 = inlined_call_operand.vmem [shape: f32[1,128], index: 1, kind: input, shape index: {}]
  %s2 = inlined_call_operand.vmem [shape: f32[1,128], index: 2, kind: input, shape index: {}]
  %s3 = inlined_call_operand.hbm [shape: f32[8,8,128], index: 3, kind: input, shape index: {}]
  %s4 = inlined_call_operand.hbm [shape: f32[8,8,128], index: 4, kind: output, shape index: {}]
  %s5 = sld [smem:[#allocation0]]
  $region34: #{tpu_custom_call.1} parent=0
    _
  %s7 = ssub.s32 1, %s5
  %s8 = scalar_select 0, %s7, %s5
  $region1: #{tpu_custom_call.1} parent=0
    #allocation2 [shape = 'u8[512]{0}', space=vmem, size = 0x400, scoped, tag = 'input window, operand 0, single buffered']
    #allocation3 [shape = 's32[1]{0}', space=sflag, size = 0x4, scoped, tag = 'scoped memory for tpu_custom_call.1']
    #allocation4 [shape = 's32[1]{0}', space=sflag, size = 0x4, scoped, tag = 'scoped memory for tpu_custom_call.1']
    #allocation5 [shape = 'u8[32768]{0}', space=vmem, size = 0x8000, scoped, tag = 'input window, operand 3, single buffered']
    #allocation6 [shape = 's32[1]{0}', space=sflag, size = 0x4, scoped, tag = 'scoped memory for tpu_custom_call.1']
    #allocation7 [shape = 'u8[32768]{0}', space=vmem, size = 0x8000, scoped, tag = 'output window, operand 0, single buffered']
    %9 = vsyncpa [#allocation3], 0
    %10 = vsyncpa [#allocation6], 0
    %11 = vsyncpa [#allocation4], 0
    // Predicated region
    $region2: #{tpu_custom_call.1} parent=1 // pred_check
      _
    $region3: #{tpu_custom_call.1} parent=1 // pred_check_branch
      %13 = sbr.rel (0) target = $region5
    $region4: #{tpu_custom_call.1} parent=1 // pred_region
      %s15 = ssub.s32 16, 16
      %16 = vsyncadd [#allocation3], %s15
      %s18 = sshll.u32 [#allocation2], 4
      %s19 = int_to_ptr.vmem [resolvable:$true] %s18
      %21 = dma.hbm_to_vmem [thread:$0]  %s0, 16, %s19, [#allocation3]
    $region5: #{tpu_custom_call.1} parent=1 // pred_fallthru
      _
    // Predicated region
    $region6: #{tpu_custom_call.1} parent=1 // pred_check
      _
    $region7: #{tpu_custom_call.1} parent=1 // pred_check_branch
      %23 = sbr.rel (0) target = $region9
    $region8: #{tpu_custom_call.1} parent=1 // pred_region
      _
    $region9: #{tpu_custom_call.1} parent=1 // pred_fallthru
      _
    // Predicated region
    $region10: #{tpu_custom_call.1} parent=1 // pred_check
      _
    $region11: #{tpu_custom_call.1} parent=1 // pred_check_branch
      %25 = sbr.rel (0) target = $region13
    $region12: #{tpu_custom_call.1} parent=1 // pred_region
      _
    $region13: #{tpu_custom_call.1} parent=1 // pred_fallthru
      _
    // Predicated region
    $region14: #{tpu_custom_call.1} parent=1 // pred_check
      _
    $region15: #{tpu_custom_call.1} parent=1 // pred_check_branch
      %27 = sbr.rel (0) target = $region17
    $region16: #{tpu_custom_call.1} parent=1 // pred_region
      %s29 = ssub.s32 1024, 1024
      %30 = vsyncadd [#allocation6], %s29
      %s31 = sshll.u32 [#allocation5], 4
      %s32 = int_to_ptr.vmem [resolvable:$true] %s31
      %37 = dma.hbm_to_vmem [thread:$0]  %s3, 1024, %s32, [#allocation6], 128, 128, 8
    $region17: #{tpu_custom_call.1} parent=1 // pred_fallthru
      _
    // Predicated region
    $region18: #{tpu_custom_call.1} parent=1 // pred_check
      _
    $region19: #{tpu_custom_call.1} parent=1 // pred_check_branch
      %39 = sbr.rel (0) target = $region21
    $region20: #{tpu_custom_call.1} parent=1 // pred_region
      %40 = dma.done [#allocation3], 16
    $region21: #{tpu_custom_call.1} parent=1 // pred_fallthru
      _
    // Predicated region
    $region22: #{tpu_custom_call.1} parent=1 // pred_check
      _
    $region23: #{tpu_custom_call.1} parent=1 // pred_check_branch
      %42 = sbr.rel (0) target = $region25
    $region24: #{tpu_custom_call.1} parent=1 // pred_region
      %43 = dma.done [#allocation6], 1024
    $region25: #{tpu_custom_call.1} parent=1 // pred_fallthru
      _
    %v44 = vld [vmem:[#allocation2] sm:$0x1]
    %v45 = vld [vmem:[%s1] sm:$0x1]
    %v46 = vld [vmem:[%s2] sm:$0x1]
    %v47 = vld [vmem:[#allocation5] sm:$0xff]
    %v48 = vld [vmem:[#allocation5 + $0x8] sm:$0xff]
    %v49 = vld [vmem:[#allocation5 + $0x10] sm:$0xff]
    %v50 = vld [vmem:[#allocation5 + $0x18] sm:$0xff]
    %v51 = vld [vmem:[#allocation5 + $0x20] sm:$0xff]
    %v52 = vld [vmem:[#allocation5 + $0x28] sm:$0xff]
    %v53 = vld [vmem:[#allocation5 + $0x30] sm:$0xff]
    %v54 = vld [vmem:[#allocation5 + $0x38] sm:$0xff]
    %v55 = vadd.f32 %v51, 1.0
    %v56 = vadd.f32 %v52, 1.0
    %v57 = vmul.f32 %v55, %v55
    %v58 = vmul.f32 %v56, %v56
    %v59 = vmul.f32 %v53, %v53
    %v60 = vmul.f32 %v54, %v54
    %v61 = vadd.f32 %v57, %v59
    %v62 = vadd.f32 %v58, %v60
    %v63 = vrcp.pop %v61
    %v64 = vmul.f32 1.0, %v63
    %v65 = vrcp.pop %v62
    %v66 = vmul.f32 1.0, %v65
    %v67 = vsub.f32 %v51, 1.0
    %v68 = vsub.f32 %v52, 1.0
    %v69 = vmul.f32 %v67, %v55
    %v70 = vmul.f32 %v68, %v56
    %v71 = vadd.f32 %v69, %v59
    %v72 = vadd.f32 %v70, %v60
    %v73 = vmul.f32 %v71, %v64
    %v74 = vmul.f32 %v72, %v66
    %v75 = vmul.f32 %v53, 2.0
    %v76 = vmul.f32 %v54, 2.0
    %v77 = vmul.f32 %v75, %v64
    %v78 = vmul.f32 %v76, %v66
    %v80 = vlaneseq
    %v81 = vshrl.u32 %v80, 7
    %v82 = vsub.s32 0, %v81
    %v83 = vrot.slane %v44, %v82
    %v85 = vmul.f32 %v83, %v49
    %v86 = vmul.f32 %v83, %v50
    %v87 = vsub.f32 0.0, %v85
    %v88 = vsub.f32 0.0, %v86
    %v89 = vmul.f32 %v87, 1.442695
    %v90 = vpow.pop %v89
    %v91 = vmul.f32 %v88, 1.442695
    %v92 = vpow.pop %v91
    %v93 = vmul.f32 %v83, %v47
    %v94 = vmul.f32 %v83, %v48
    %v95 = vand.u32 2147483647, %v93
    %vm96 = vcmp.le.f32.partialorder %v95, 0.7853982
    %vm97 = vcmp.lt.s32.totalorder %v93, 0
    %v98 = vand.u32 %v93, 2139095040
    %v99 = vshrl.u32 %v98, 23
    %v100 = vsub.s32 %v99, 127
    %v101 = vand.u32 2147483647, %v93
    %v102 = vand.u32 %v101, 8388607
    %v103 = vor.u32 %v102, 8388608
    %v104 = vsub.s32 0, %v103
    %v105 = vadd.s32 %v100, 1
    %vm106 = vcmp.gt.s32.totalorder %v105, 0
    %v107 = vsel %vm106, %v105, 0
    %v108 = vshrl.u32 %v107, 5
    %v109 = vand.u32 %v107, 31
    %v110 = vsub.s32 32, %v109
    %v111 = vshrl.u32 683565275, %v110
    %v112 = vshll.u32 683565275, %v109
    %v113 = vshrl.u32 2475754826, %v110
    %v114 = vor.u32 %v112, %v113
    %v115 = vshll.u32 2475754826, %v109
    %v116 = vshrl.u32 2131351028, %v110
    %v117 = vor.u32 %v115, %v116
    %v118 = vshll.u32 2131351028, %v109
    %v119 = vshrl.u32 2102212464, %v110
    %v120 = vor.u32 %v118, %v119
    %v121 = vshll.u32 2102212464, %v109
    %v122 = vshrl.u32 920167782, %v110
    %v123 = vor.u32 %v121, %v122
    %v124 = vshll.u32 920167782, %v109
    %v125 = vshrl.u32 1326507024, %v110
    %v126 = vor.u32 %v124, %v125
    %vm127 = vcmp.lt.s32.totalorder %v108, 1
    %vm128 = vcmp.lt.s32.totalorder %v108, 2
    %vm129 = vcmp.lt.s32.totalorder %v108, 3
    %vm130 = vcmp.lt.s32.totalorder %v108, 4
    %v131 = vsel %vm127, %v111, %v114
    %v132 = vsel %vm130, %v120, 2102212464
    %v133 = vsel %vm129, %v117, %v132
    %v134 = vsel %vm128, %v131, %v133
    %v135 = vsel %vm127, %v114, %v117
    %v136 = vsel %vm130, %v123, 920167782
    %v137 = vsel %vm129, %v120, %v136
    %v138 = vsel %vm128, %v135, %v137
    %v139 = vsel %vm127, %v117, %v120
    %v140 = vsel %vm130, %v126, 1326507024
    %v141 = vsel %vm129, %v123, %v140
    %v142 = vsel %vm128, %v139, %v141
    %v143 = vshll.u32 %v103, 8
    %v144 = vmul.u32.u64.compose %v143, %v142
    %v145 = vextract.low.u32 %v144
    %v146 = vextract.high.u32 %v144
    %v147 = vmul.u32.u64.compose %v143, %v138
    %v148 = vextract.low.u32 %v147
    %v149 = vextract.high.u32 %v147
    %v150 = vmul.u32 %v143, %v134
    %v151 = vadd.s32 %v146, %v148
    %vm152 = vc.u32 %v146, %v148
    %v153 = vadd.s32 %v149, 1
    %v154 = vsel %vm152, %v153, %v149
    %v155 = vadd.s32 %v150, %v154
    %v156 = vadd.s32 %v155, 536870912
    %v157 = vshrl.u32 %v156, 30
    %v158 = vshll.u32 %v157, 30
    %v159 = vsub.s32 %v155, %v158
    %vm160 = vcmp.lt.s32.totalorder %v159, 0
    %v161 = vsub.s32 0, %v159
    %v162 = vsel %vm160, %v161, %v159
    %v163 = vclz %v162
    %v164 = vsub.s32 %v163, 2
    %vm165 = vcmp.gt.s32.totalorder 0, %v164
    %v166 = vsel %vm165, 0, %v164
    %v167 = vsub.s32 32, %v166
    %v168 = vshll.u32 %v159, %v166
    %v169 = vshrl.u32 %v151, %v167
    %v170 = vor.u32 %v168, %v169
    %v171 = vsub.s32 4294967266, %v166
    %v172 = vadd.s32 %v171, 127
    %v173 = vshll.u32 %v172, 23
    %v174 = vor.u32 4788187, %v173
    %v175 = vand.u32 2147483647, %v174
    %v177 = vcvt.s32.f32 %v170
    %v178 = vmul.f32 %v177, %v175
    %v179 = vxor.u32 %v178, 2147483648
    %v180 = vsel %vm97, %v179, %v178
    %v181 = vsub.s32 4, %v157
    %v182 = vsel %vm97, %v181, %v157
    %v183 = vsel %vm96, %v93, %v180
    %v184 = vsel %vm96, 0, %v182
    %v185 = vcosq.f32.pop %v183
    %v186 = vsinq.f32.pop %v183
    %vm187 = vweird.f32 %v93
    %v188 = vand.u32 %v184, 3
    %vm189 = vcmp.lt.s32.totalorder %v188, 2
    %vm190 = vcmp.eq.s32.totalorder %v188, 0
    %v191 = vxor.u32 %v186, 2147483648
    %v192 = vsel %vm190, %v185, %v191
    %vm193 = vcmp.eq.s32.totalorder %v188, 2
    %v194 = vxor.u32 %v185, 2147483648
    %v195 = vsel %vm193, %v194, %v186
    %v196 = vsel %vm189, %v192, %v195
    %v197 = vsel %vm187, nan, %v196
    %v198 = vand.u32 2147483647, %v94
    %vm199 = vcmp.le.f32.partialorder %v198, 0.7853982
    %vm200 = vcmp.lt.s32.totalorder %v94, 0
    %v201 = vand.u32 %v94, 2139095040
    %v202 = vshrl.u32 %v201, 23
    %v203 = vsub.s32 %v202, 127
    %v204 = vand.u32 2147483647, %v94
    %v205 = vand.u32 %v204, 8388607
    %v206 = vor.u32 %v205, 8388608
    %v207 = vsub.s32 0, %v206
    %v208 = vadd.s32 %v203, 1
    %vm209 = vcmp.gt.s32.totalorder %v208, 0
    %v210 = vsel %vm209, %v208, 0
    %v211 = vshrl.u32 %v210, 5
    %v212 = vand.u32 %v210, 31
    %v213 = vsub.s32 32, %v212
    %v214 = vshrl.u32 683565275, %v213
    %v215 = vshll.u32 683565275, %v212
    %v216 = vshrl.u32 2475754826, %v213
    %v217 = vor.u32 %v215, %v216
    %v218 = vshll.u32 2475754826, %v212
    %v219 = vshrl.u32 2131351028, %v213
    %v220 = vor.u32 %v218, %v219
    %v221 = vshll.u32 2131351028, %v212
    %v222 = vshrl.u32 2102212464, %v213
    %v223 = vor.u32 %v221, %v222
    %v224 = vshll.u32 2102212464, %v212
    %v225 = vshrl.u32 920167782, %v213
    %v226 = vor.u32 %v224, %v225
    %v227 = vshll.u32 920167782, %v212
    %v228 = vshrl.u32 1326507024, %v213
    %v229 = vor.u32 %v227, %v228
    %vm230 = vcmp.lt.s32.totalorder %v211, 1
    %vm231 = vcmp.lt.s32.totalorder %v211, 2
    %vm232 = vcmp.lt.s32.totalorder %v211, 3
    %vm233 = vcmp.lt.s32.totalorder %v211, 4
    %v234 = vsel %vm230, %v214, %v217
    %v235 = vsel %vm233, %v223, 2102212464
    %v236 = vsel %vm232, %v220, %v235
    %v237 = vsel %vm231, %v234, %v236
    %v238 = vsel %vm230, %v217, %v220
    %v239 = vsel %vm233, %v226, 920167782
    %v240 = vsel %vm232, %v223, %v239
    %v241 = vsel %vm231, %v238, %v240
    %v242 = vsel %vm230, %v220, %v223
    %v243 = vsel %vm233, %v229, 1326507024
    %v244 = vsel %vm232, %v226, %v243
    %v245 = vsel %vm231, %v242, %v244
    %v246 = vshll.u32 %v206, 8
    %v247 = vmul.u32.u64.compose %v246, %v245
    %v248 = vextract.low.u32 %v247
    %v249 = vextract.high.u32 %v247
    %v250 = vmul.u32.u64.compose %v246, %v241
    %v251 = vextract.low.u32 %v250
    %v252 = vextract.high.u32 %v250
    %v253 = vmul.u32 %v246, %v237
    %v254 = vadd.s32 %v249, %v251
    %vm255 = vc.u32 %v249, %v251
    %v256 = vadd.s32 %v252, 1
    %v257 = vsel %vm255, %v256, %v252
    %v258 = vadd.s32 %v253, %v257
    %v259 = vadd.s32 %v258, 536870912
    %v260 = vshrl.u32 %v259, 30
    %v261 = vshll.u32 %v260, 30
    %v262 = vsub.s32 %v258, %v261
    %vm263 = vcmp.lt.s32.totalorder %v262, 0
    %v264 = vsub.s32 0, %v262
    %v265 = vsel %vm263, %v264, %v262
    %v266 = vclz %v265
    %v267 = vsub.s32 %v266, 2
    %vm268 = vcmp.gt.s32.totalorder 0, %v267
    %v269 = vsel %vm268, 0, %v267
    %v270 = vsub.s32 32, %v269
    %v271 = vshll.u32 %v262, %v269
    %v272 = vshrl.u32 %v254, %v270
    %v273 = vor.u32 %v271, %v272
    %v274 = vsub.s32 4294967266, %v269
    %v275 = vadd.s32 %v274, 127
    %v276 = vshll.u32 %v275, 23
    %v277 = vor.u32 4788187, %v276
    %v278 = vand.u32 2147483647, %v277
    %v280 = vcvt.s32.f32 %v273
    %v281 = vmul.f32 %v280, %v278
    %v282 = vxor.u32 %v281, 2147483648
    %v283 = vsel %vm200, %v282, %v281
    %v284 = vsub.s32 4, %v260
    %v285 = vsel %vm200, %v284, %v260
    %v286 = vsel %vm199, %v94, %v283
    %v287 = vsel %vm199, 0, %v285
    %v288 = vcosq.f32.pop %v286
    %v289 = vsinq.f32.pop %v286
    %vm290 = vweird.f32 %v94
    %v291 = vand.u32 %v287, 3
    %vm292 = vcmp.lt.s32.totalorder %v291, 2
    %vm293 = vcmp.eq.s32.totalorder %v291, 0
    %v294 = vxor.u32 %v289, 2147483648
    %v295 = vsel %vm293, %v288, %v294
    %vm296 = vcmp.eq.s32.totalorder %v291, 2
    %v297 = vxor.u32 %v288, 2147483648
    %v298 = vsel %vm296, %v297, %v289
    %v299 = vsel %vm292, %v295, %v298
    %v300 = vsel %vm290, nan, %v299
    %v301 = vmul.f32 %v90, %v197
    %v302 = vmul.f32 %v92, %v300
    %v303 = vand.u32 2147483647, %v93
    %vm304 = vcmp.le.f32.partialorder %v303, 0.7853982
    %vm305 = vcmp.lt.s32.totalorder %v93, 0
    %v306 = vand.u32 %v93, 2139095040
    %v307 = vshrl.u32 %v306, 23
    %v308 = vsub.s32 %v307, 127
    %v309 = vand.u32 2147483647, %v93
    %v310 = vand.u32 %v309, 8388607
    %v311 = vor.u32 %v310, 8388608
    %v312 = vsub.s32 0, %v311
    %v313 = vadd.s32 %v308, 1
    %vm314 = vcmp.gt.s32.totalorder %v313, 0
    %v315 = vsel %vm314, %v313, 0
    %v316 = vshrl.u32 %v315, 5
    %v317 = vand.u32 %v315, 31
    %v318 = vsub.s32 32, %v317
    %v319 = vshrl.u32 683565275, %v318
    %v320 = vshll.u32 683565275, %v317
    %v321 = vshrl.u32 2475754826, %v318
    %v322 = vor.u32 %v320, %v321
    %v323 = vshll.u32 2475754826, %v317
    %v324 = vshrl.u32 2131351028, %v318
    %v325 = vor.u32 %v323, %v324
    %v326 = vshll.u32 2131351028, %v317
    %v327 = vshrl.u32 2102212464, %v318
    %v328 = vor.u32 %v326, %v327
    %v329 = vshll.u32 2102212464, %v317
    %v330 = vshrl.u32 920167782, %v318
    %v331 = vor.u32 %v329, %v330
    %v332 = vshll.u32 920167782, %v317
    %v333 = vshrl.u32 1326507024, %v318
    %v334 = vor.u32 %v332, %v333
    %vm335 = vcmp.lt.s32.totalorder %v316, 1
    %vm336 = vcmp.lt.s32.totalorder %v316, 2
    %vm337 = vcmp.lt.s32.totalorder %v316, 3
    %vm338 = vcmp.lt.s32.totalorder %v316, 4
    %v339 = vsel %vm335, %v319, %v322
    %v340 = vsel %vm338, %v328, 2102212464
    %v341 = vsel %vm337, %v325, %v340
    %v342 = vsel %vm336, %v339, %v341
    %v343 = vsel %vm335, %v322, %v325
    %v344 = vsel %vm338, %v331, 920167782
    %v345 = vsel %vm337, %v328, %v344
    %v346 = vsel %vm336, %v343, %v345
    %v347 = vsel %vm335, %v325, %v328
    %v348 = vsel %vm338, %v334, 1326507024
    %v349 = vsel %vm337, %v331, %v348
    %v350 = vsel %vm336, %v347, %v349
    %v351 = vshll.u32 %v311, 8
    %v352 = vmul.u32.u64.compose %v351, %v350
    %v353 = vextract.low.u32 %v352
    %v354 = vextract.high.u32 %v352
    %v355 = vmul.u32.u64.compose %v351, %v346
    %v356 = vextract.low.u32 %v355
    %v357 = vextract.high.u32 %v355
    %v358 = vmul.u32 %v351, %v342
    %v359 = vadd.s32 %v354, %v356
    %vm360 = vc.u32 %v354, %v356
    %v361 = vadd.s32 %v357, 1
    %v362 = vsel %vm360, %v361, %v357
    %v363 = vadd.s32 %v358, %v362
    %v364 = vadd.s32 %v363, 536870912
    %v365 = vshrl.u32 %v364, 30
    %v366 = vshll.u32 %v365, 30
    %v367 = vsub.s32 %v363, %v366
    %vm368 = vcmp.lt.s32.totalorder %v367, 0
    %v369 = vsub.s32 0, %v367
    %v370 = vsel %vm368, %v369, %v367
    %v371 = vclz %v370
    %v372 = vsub.s32 %v371, 2
    %vm373 = vcmp.gt.s32.totalorder 0, %v372
    %v374 = vsel %vm373, 0, %v372
    %v375 = vsub.s32 32, %v374
    %v376 = vshll.u32 %v367, %v374
    %v377 = vshrl.u32 %v359, %v375
    %v378 = vor.u32 %v376, %v377
    %v379 = vsub.s32 4294967266, %v374
    %v380 = vadd.s32 %v379, 127
    %v381 = vshll.u32 %v380, 23
    %v382 = vor.u32 4788187, %v381
    %v383 = vand.u32 2147483647, %v382
    %v385 = vcvt.s32.f32 %v378
    %v386 = vmul.f32 %v385, %v383
    %v387 = vxor.u32 %v386, 2147483648
    %v388 = vsel %vm305, %v387, %v386
    %v389 = vsub.s32 4, %v365
    %v390 = vsel %vm305, %v389, %v365
    %v391 = vsel %vm304, %v93, %v388
    %v392 = vsel %vm304, 0, %v390
    %v393 = vcosq.f32.pop %v391
    %v394 = vsinq.f32.pop %v391
    %vm395 = vweird.f32 %v93
    %v396 = vadd.s32 %v392, 3
    %v397 = vand.u32 %v396, 3
    %vm398 = vcmp.lt.s32.totalorder %v397, 2
    %vm399 = vcmp.eq.s32.totalorder %v397, 0
    %v400 = vxor.u32 %v394, 2147483648
    %v401 = vsel %vm399, %v393, %v400
    %vm402 = vcmp.eq.s32.totalorder %v397, 2
    %v403 = vxor.u32 %v393, 2147483648
    %v404 = vsel %vm402, %v403, %v394
    %v405 = vsel %vm398, %v401, %v404
    %v406 = vsel %vm395, nan, %v405
    %v407 = vand.u32 2147483647, %v94
    %vm408 = vcmp.le.f32.partialorder %v407, 0.7853982
    %vm409 = vcmp.lt.s32.totalorder %v94, 0
    %v410 = vand.u32 %v94, 2139095040
    %v411 = vshrl.u32 %v410, 23
    %v412 = vsub.s32 %v411, 127
    %v413 = vand.u32 2147483647, %v94
    %v414 = vand.u32 %v413, 8388607
    %v415 = vor.u32 %v414, 8388608
    %v416 = vsub.s32 0, %v415
    %v417 = vadd.s32 %v412, 1
    %vm418 = vcmp.gt.s32.totalorder %v417, 0
    %v419 = vsel %vm418, %v417, 0
    %v420 = vshrl.u32 %v419, 5
    %v421 = vand.u32 %v419, 31
    %v422 = vsub.s32 32, %v421
    %v423 = vshrl.u32 683565275, %v422
    %v424 = vshll.u32 683565275, %v421
    %v425 = vshrl.u32 2475754826, %v422
    %v426 = vor.u32 %v424, %v425
    %v427 = vshll.u32 2475754826, %v421
    %v428 = vshrl.u32 2131351028, %v422
    %v429 = vor.u32 %v427, %v428
    %v430 = vshll.u32 2131351028, %v421
    %v431 = vshrl.u32 2102212464, %v422
    %v432 = vor.u32 %v430, %v431
    %v433 = vshll.u32 2102212464, %v421
    %v434 = vshrl.u32 920167782, %v422
    %v435 = vor.u32 %v433, %v434
    %v436 = vshll.u32 920167782, %v421
    %v437 = vshrl.u32 1326507024, %v422
    %v438 = vor.u32 %v436, %v437
    %vm439 = vcmp.lt.s32.totalorder %v420, 1
    %vm440 = vcmp.lt.s32.totalorder %v420, 2
    %vm441 = vcmp.lt.s32.totalorder %v420, 3
    %vm442 = vcmp.lt.s32.totalorder %v420, 4
    %v443 = vsel %vm439, %v423, %v426
    %v444 = vsel %vm442, %v432, 2102212464
    %v445 = vsel %vm441, %v429, %v444
    %v446 = vsel %vm440, %v443, %v445
    %v447 = vsel %vm439, %v426, %v429
    %v448 = vsel %vm442, %v435, 920167782
    %v449 = vsel %vm441, %v432, %v448
    %v450 = vsel %vm440, %v447, %v449
    %v451 = vsel %vm439, %v429, %v432
    %v452 = vsel %vm442, %v438, 1326507024
    %v453 = vsel %vm441, %v435, %v452
    %v454 = vsel %vm440, %v451, %v453
    %v455 = vshll.u32 %v415, 8
    %v456 = vmul.u32.u64.compose %v455, %v454
    %v457 = vextract.low.u32 %v456
    %v458 = vextract.high.u32 %v456
    %v459 = vmul.u32.u64.compose %v455, %v450
    %v460 = vextract.low.u32 %v459
    %v461 = vextract.high.u32 %v459
    %v462 = vmul.u32 %v455, %v446
    %v463 = vadd.s32 %v458, %v460
    %vm464 = vc.u32 %v458, %v460
    %v465 = vadd.s32 %v461, 1
    %v466 = vsel %vm464, %v465, %v461
    %v467 = vadd.s32 %v462, %v466
    %v468 = vadd.s32 %v467, 536870912
    %v469 = vshrl.u32 %v468, 30
    %v470 = vshll.u32 %v469, 30
    %v471 = vsub.s32 %v467, %v470
    %vm472 = vcmp.lt.s32.totalorder %v471, 0
    %v473 = vsub.s32 0, %v471
    %v474 = vsel %vm472, %v473, %v471
    %v475 = vclz %v474
    %v476 = vsub.s32 %v475, 2
    %vm477 = vcmp.gt.s32.totalorder 0, %v476
    %v478 = vsel %vm477, 0, %v476
    %v479 = vsub.s32 32, %v478
    %v480 = vshll.u32 %v471, %v478
    %v481 = vshrl.u32 %v463, %v479
    %v482 = vor.u32 %v480, %v481
    %v483 = vsub.s32 4294967266, %v478
    %v484 = vadd.s32 %v483, 127
    %v485 = vshll.u32 %v484, 23
    %v486 = vor.u32 4788187, %v485
    %v487 = vand.u32 2147483647, %v486
    %v489 = vcvt.s32.f32 %v482
    %v490 = vmul.f32 %v489, %v487
    %v491 = vxor.u32 %v490, 2147483648
    %v492 = vsel %vm409, %v491, %v490
    %v493 = vsub.s32 4, %v469
    %v494 = vsel %vm409, %v493, %v469
    %v495 = vsel %vm408, %v94, %v492
    %v496 = vsel %vm408, 0, %v494
    %v497 = vcosq.f32.pop %v495
    %v498 = vsinq.f32.pop %v495
    %vm499 = vweird.f32 %v94
    %v500 = vadd.s32 %v496, 3
    %v501 = vand.u32 %v500, 3
    %vm502 = vcmp.lt.s32.totalorder %v501, 2
    %vm503 = vcmp.eq.s32.totalorder %v501, 0
    %v504 = vxor.u32 %v498, 2147483648
    %v505 = vsel %vm503, %v497, %v504
    %vm506 = vcmp.eq.s32.totalorder %v501, 2
    %v507 = vxor.u32 %v497, 2147483648
    %v508 = vsel %vm506, %v507, %v498
    %v509 = vsel %vm502, %v505, %v508
    %v510 = vsel %vm499, nan, %v509
    %v511 = vmul.f32 %v90, %v406
    %v512 = vmul.f32 %v92, %v510
    %v513 = vmul.f32 %v301, %v301
    %v514 = vmul.f32 %v302, %v302
    %v515 = vmul.f32 %v511, %v511
    %v516 = vmul.f32 %v512, %v512
    %v517 = vsub.f32 %v513, %v515
    %v518 = vsub.f32 %v514, %v516
    %v519 = vmul.f32 %v301, 2.0
    %v520 = vmul.f32 %v302, 2.0
    %v521 = vmul.f32 %v519, %v511
    %v522 = vmul.f32 %v520, %v512
    %v523 = vmul.f32 %v73, %v73
    %v524 = vmul.f32 %v74, %v74
    %v525 = vmul.f32 %v77, %v77
    %v526 = vmul.f32 %v78, %v78
    %v527 = vsub.f32 %v523, %v525
    %v528 = vsub.f32 %v524, %v526
    %v529 = vmul.f32 %v73, 2.0
    %v530 = vmul.f32 %v74, 2.0
    %v531 = vmul.f32 %v529, %v77
    %v532 = vmul.f32 %v530, %v78
    %v533 = vmul.f32 %v527, %v517
    %v534 = vmul.f32 %v528, %v518
    %v535 = vmul.f32 %v531, %v521
    %v536 = vmul.f32 %v532, %v522
    %v537 = vsub.f32 %v533, %v535
    %v538 = vsub.f32 %v534, %v536
    %v539 = vmul.f32 %v527, %v521
    %v540 = vmul.f32 %v528, %v522
    %v541 = vmul.f32 %v531, %v517
    %v542 = vmul.f32 %v532, %v518
    %v543 = vadd.f32 %v539, %v541
    %v544 = vadd.f32 %v540, %v542
    %v545 = vsub.f32 1.0, %v537
    %v546 = vsub.f32 1.0, %v538
    %v547 = vsub.f32 0.0, %v543
    %v548 = vsub.f32 0.0, %v544
    %v549 = vmul.f32 %v545, %v545
    %v550 = vmul.f32 %v546, %v546
    %v551 = vmul.f32 %v547, %v547
    %v552 = vmul.f32 %v548, %v548
    %v553 = vadd.f32 %v549, %v551
    %v554 = vadd.f32 %v550, %v552
    %v555 = vrcp.pop %v553
    %v556 = vmul.f32 1.0, %v555
    %v557 = vrcp.pop %v554
    %v558 = vmul.f32 1.0, %v557
    %v559 = vsub.f32 1.0, %v517
    %v560 = vsub.f32 1.0, %v518
    %v561 = vsub.f32 0.0, %v521
    %v562 = vsub.f32 0.0, %v522
    %v563 = vmul.f32 %v73, %v559
    %v564 = vmul.f32 %v74, %v560
    %v565 = vmul.f32 %v77, %v561
    %v566 = vmul.f32 %v78, %v562
    %v567 = vsub.f32 %v563, %v565
    %v568 = vsub.f32 %v564, %v566
    %v569 = vmul.f32 %v73, %v561
    %v570 = vmul.f32 %v74, %v562
    %v571 = vmul.f32 %v77, %v559
    %v572 = vmul.f32 %v78, %v560
    %v573 = vadd.f32 %v569, %v571
    %v574 = vadd.f32 %v570, %v572
    %v575 = vmul.f32 %v567, %v545
    %v576 = vmul.f32 %v568, %v546
    %v577 = vmul.f32 %v573, %v547
    %v578 = vmul.f32 %v574, %v548
    %v579 = vadd.f32 %v575, %v577
    %v580 = vadd.f32 %v576, %v578
    %v581 = vmul.f32 %v579, %v556
    %v582 = vmul.f32 %v580, %v558
    %v583 = vmul.f32 %v573, %v545
    %v584 = vmul.f32 %v574, %v546
    %v585 = vmul.f32 %v567, %v547
    %v586 = vmul.f32 %v568, %v548
    %v587 = vsub.f32 %v583, %v585
    %v588 = vsub.f32 %v584, %v586
    %v589 = vmul.f32 %v587, %v556
    %v590 = vmul.f32 %v588, %v558
    %v591 = vsub.f32 1.0, %v527
    %v592 = vsub.f32 1.0, %v528
    %v593 = vsub.f32 0.0, %v531
    %v594 = vsub.f32 0.0, %v532
    %v595 = vmul.f32 %v591, %v301
    %v596 = vmul.f32 %v592, %v302
    %v597 = vmul.f32 %v593, %v511
    %v598 = vmul.f32 %v594, %v512
    %v599 = vsub.f32 %v595, %v597
    %v600 = vsub.f32 %v596, %v598
    %v601 = vmul.f32 %v591, %v511
    %v602 = vmul.f32 %v592, %v512
    %v603 = vmul.f32 %v593, %v301
    %v604 = vmul.f32 %v594, %v302
    %v605 = vadd.f32 %v601, %v603
    %v606 = vadd.f32 %v602, %v604
    %v607 = vmul.f32 %v599, %v545
    %v608 = vmul.f32 %v600, %v546
    %v609 = vmul.f32 %v605, %v547
    %v610 = vmul.f32 %v606, %v548
    %v611 = vadd.f32 %v607, %v609
    %v612 = vadd.f32 %v608, %v610
    %v613 = vmul.f32 %v611, %v556
    %v614 = vmul.f32 %v612, %v558
    %v615 = vmul.f32 %v605, %v545
    %v616 = vmul.f32 %v606, %v546
    %v617 = vmul.f32 %v599, %v547
    %v618 = vmul.f32 %v600, %v548
    %v619 = vsub.f32 %v615, %v617
    %v620 = vsub.f32 %v616, %v618
    %v621 = vmul.f32 %v619, %v556
    %v622 = vmul.f32 %v620, %v558
    %v624 = vlaneseq
    %v625 = vshrl.u32 %v624, 7
    %v626 = vsub.s32 0, %v625
    %v627 = vrot.slane %v45, %v626
    %v629 = vmul.f32 %v613, %v627
    %v630 = vmul.f32 %v614, %v627
    %v632 = vlaneseq
    %v633 = vshrl.u32 %v632, 7
    %v634 = vsub.s32 0, %v633
    %v635 = vrot.slane %v46, %v634
    %v637 = vmul.f32 %v621, %v635
    %v638 = vmul.f32 %v622, %v635
    %v639 = vadd.f32 %v629, %v637
    %v640 = vadd.f32 %v630, %v638
    %v641 = vmul.f32 %v621, %v627
    %v642 = vmul.f32 %v622, %v627
    %v643 = vmul.f32 %v613, %v635
    %v644 = vmul.f32 %v614, %v635
    %v645 = vsub.f32 %v641, %v643
    %v646 = vsub.f32 %v642, %v644
    %647 = vst [vmem:[#allocation7] sm:$0xff] %v581
    %648 = vst [vmem:[#allocation7 + $0x8] sm:$0xff] %v589
    %649 = vst [vmem:[#allocation7 + $0x10] sm:$0xff] %v582
    %650 = vst [vmem:[#allocation7 + $0x18] sm:$0xff] %v590
    %651 = vst [vmem:[#allocation7 + $0x20] sm:$0xff] %v639
    %652 = vst [vmem:[#allocation7 + $0x28] sm:$0xff] %v645
    %653 = vst [vmem:[#allocation7 + $0x30] sm:$0xff] %v640
    %654 = vst [vmem:[#allocation7 + $0x38] sm:$0xff] %v646
    // Predicated region
    $region26: #{tpu_custom_call.1} parent=1 // pred_check
      _
    $region27: #{tpu_custom_call.1} parent=1 // pred_check_branch
      %656 = sbr.rel (0) target = $region29
    $region28: #{tpu_custom_call.1} parent=1 // pred_region
      %s658 = ssub.s32 1024, 1024
      %659 = vsyncadd [#allocation4], %s658
      %s660 = sshll.u32 [#allocation7], 4
      %s661 = int_to_ptr.vmem [resolvable:$true] %s660
      %666 = dma.vmem_to_hbm [thread:$0]  %s661, 1024, %s4, [#allocation4], 128, 128, 8
    $region29: #{tpu_custom_call.1} parent=1 // pred_fallthru
      _
    // Predicated region
    $region30: #{tpu_custom_call.1} parent=1 // pred_check
      _
    $region31: #{tpu_custom_call.1} parent=1 // pred_check_branch
      %668 = sbr.rel (0) target = $region33
    $region32: #{tpu_custom_call.1} parent=1 // pred_region
      %669 = dma.done [#allocation4], 1024
    $region33: #{tpu_custom_call.1} parent=1 // pred_fallthru
      _
    %670 = vsyncpa [#allocation3], 1
    %671 = vsyncpa [#allocation6], 1
    %672 = vsyncpa [#allocation4], 1

</llo_original>
